<compile_context>
chip_gen: v6e
topology: v6e:2x2x1
jax: 0.10.0
libtpu: 0.0.40
codegen_flags: <defaults>
</compile_context>

<pallas_src>
import jax
import jax.numpy as jnp
from jax.experimental import pallas as pl
from jax.experimental.pallas import tpu as pltpu

LANE = 128  # TPU lane width; output columns are padded to this for lane-dense stores.


def dqn_mlp_kernel(x_ref, w1_ref, b1_ref, w2_ref, b2_ref, w3_ref, b3_ref, o_ref):
    """One batch tile of the fused 3-layer MLP. Weights/biases stay VMEM-resident."""
    wdt = w1_ref.dtype  # matmul operand dtype (f32 or bf16); accumulation is always f32.

    h = jnp.dot(x_ref[...], w1_ref[...], preferred_element_type=jnp.float32)
    h = jnp.maximum(h + b1_ref[...], 0.0)

    h = jnp.dot(h.astype(wdt), w2_ref[...], preferred_element_type=jnp.float32)
    h = jnp.maximum(h + b2_ref[...], 0.0)

    out = jnp.dot(h.astype(wdt), w3_ref[...], preferred_element_type=jnp.float32)
    o_ref[...] = (out + b3_ref[...]).astype(o_ref.dtype)


def dqn_forward(x, params, *, compute_dtype=jnp.float32, tile_b=512):
    """Forward pass of DQNNet. x: (B, input_dim) float32. Returns (B, action_space) f32."""
    w1, b1, w2, b2, w3, b3 = params
    B, in_dim = x.shape
    H = w1.shape[1]
    A = w3.shape[1]

    # --- lane-dense output: pad the final layer to 128 output columns (zero-filled).
    a_pad = ((A + LANE - 1) // LANE) * LANE
    w3p = jnp.pad(w3, ((0, 0), (0, a_pad - A)))
    b3p = jnp.pad(b3, ((0, 0), (0, a_pad - A)))

    # --- batch tiling: tile is a multiple of 8 (sublane); pad B so every block is full.
    tb = tile_b if B >= tile_b else max(8, ((B + 7) // 8) * 8)
    n_tiles = pl.cdiv(B, tb)
    b_pad = n_tiles * tb
    xp = jnp.pad(x, ((0, b_pad - B), (0, 0)))

    # --- optional bf16 operands for the MXU (halves x's HBM bytes); biases stay f32.
    xp = xp.astype(compute_dtype)
    w1c = w1.astype(compute_dtype)
    w2c = w2.astype(compute_dtype)
    w3c = w3p.astype(compute_dtype)

    resident = lambda arr: pl.BlockSpec(arr.shape, lambda i: (0, 0))

    flops = 2 * B * (in_dim * H + H * H + H * A)
    bytes_accessed = (
        xp.size * xp.dtype.itemsize
        + b_pad * a_pad * 4
        + sum(a.size * a.dtype.itemsize for a in (w1c, b1, w2c, b2, w3c, b3p))
    )

    out = pl.pallas_call(
        dqn_mlp_kernel,
        out_shape=jax.ShapeDtypeStruct((b_pad, a_pad), jnp.float32),
        grid=(n_tiles,),
        in_specs=[
            pl.BlockSpec((tb, in_dim), lambda i: (i, 0)),  # batch-tiled activations
            resident(w1c), resident(b1),                   # resident weights/biases
            resident(w2c), resident(b2),
            resident(w3c), resident(b3p),
        ],
        out_specs=pl.BlockSpec((tb, a_pad), lambda i: (i, 0)),
        compiler_params=pltpu.CompilerParams(
            dimension_semantics=("parallel",),  # megacore-shard batch axis on v7x
        ),
        cost_estimate=pl.CostEstimate(
            flops=flops, transcendentals=0, bytes_accessed=bytes_accessed
        ),
    )(xp, w1c, b1, w2c, b2, w3c, b3p)

    return out[:B, :A]


def dqn_forward_reference(x, params):
    """Pure-JAX reference (also the preferred path for tiny batches)."""
    w1, b1, w2, b2, w3, b3 = params
    h = jnp.maximum(x @ w1 + b1, 0.0)
    h = jnp.maximum(h @ w2 + b2, 0.0)
    return h @ w3 + b3


def init_params(key, input_dim, hidden, output_dim):
    """Deterministic init mimicking torch.nn.Linear default (uniform +/- 1/sqrt(fan_in)).
    Weights are stored as (in_features, out_features)."""
    def linear_init(k, fan_in, fan_out):
        kw, kb = jax.random.split(k)
        bound = 1.0 / jnp.sqrt(jnp.float32(fan_in))
        w = jax.random.uniform(kw, (fan_in, fan_out), jnp.float32, -bound, bound)
        b = jax.random.uniform(kb, (1, fan_out), jnp.float32, -bound, bound)
        return w, b

    k1, k2, k3 = jax.random.split(key, 3)
    w1, b1 = linear_init(k1, input_dim, hidden)
    w2, b2 = linear_init(k2, hidden, hidden)
    w3, b3 = linear_init(k3, hidden, output_dim)
    return (w1, b1, w2, b2, w3, b3)


if __name__ == "__main__":
    # Shapes consistent with the module: input_dim = ob + wcon + phase.
    ob_length, wcon_length, phase_length = 12, 8, 4
    input_dim = ob_length + wcon_length + phase_length  # 24
    hidden = 20
    action_space = 8

    key = jax.random.PRNGKey(0)
    kx, kp, kx2 = jax.random.split(key, 3)
    params = init_params(kp, input_dim, hidden, action_space)

    # 1) Small-shape check (batch=2), f32 operands -> exact match vs. reference.
    x_small = jax.random.normal(kx, (2, input_dim), jnp.float32)
    out_small = jax.block_until_ready(
        dqn_forward(x_small, params, compute_dtype=jnp.float32)
    )
    ref_small = dqn_forward_reference(x_small, params)
    assert out_small.shape == (2, action_space)
    assert jnp.allclose(out_small, ref_small, atol=1e-5, rtol=1e-5)

    # 2) Multi-tile path (batch not a multiple of the tile), bf16 MXU operands.
    x_big = jax.random.normal(kx2, (1000, input_dim), jnp.float32)
    out_big = jax.block_until_ready(
        dqn_forward(x_big, params, compute_dtype=jnp.bfloat16)
    )
    ref_big = dqn_forward_reference(x_big, params)
    assert out_big.shape == (1000, action_space)
    assert jnp.allclose(out_big, ref_big, atol=5e-2, rtol=5e-2)

    print("KERNEL_OK")
</pallas_src>

<mosaic_0001>
module attributes {stable_mosaic.version = 11 : i64} {
  func.func @dqn_mlp_kernel(%arg0: i32, %arg1: memref<8x24xf32, #tpu.memory_space<vmem>>, %arg2: memref<24x20xf32, #tpu.memory_space<vmem>>, %arg3: memref<1x20xf32, #tpu.memory_space<vmem>>, %arg4: memref<20x20xf32, #tpu.memory_space<vmem>>, %arg5: memref<1x20xf32, #tpu.memory_space<vmem>>, %arg6: memref<20x128xf32, #tpu.memory_space<vmem>>, %arg7: memref<1x128xf32, #tpu.memory_space<vmem>>, %arg8: memref<8x128xf32, #tpu.memory_space<vmem>>) attributes {dimension_semantics = [#tpu.dimension_semantics<parallel>], iteration_bounds = array<i64: 1>, scalar_prefetch = 0 : i64, scratch_operands = 0 : i64, tpu.core_type = #tpu.core_type<tc>, window_params = [{transform_indices = @transform_0, window_bounds = array<i64: 8, 24>}, {pipeline_mode = #tpu.pipeline_mode<synchronous>, transform_indices = @transform_1, window_bounds = array<i64: 24, 20>}, {pipeline_mode = #tpu.pipeline_mode<synchronous>, transform_indices = @transform_2, window_bounds = array<i64: 1, 20>}, {pipeline_mode = #tpu.pipeline_mode<synchronous>, transform_indices = @transform_3, window_bounds = array<i64: 20, 20>}, {pipeline_mode = #tpu.pipeline_mode<synchronous>, transform_indices = @transform_4, window_bounds = array<i64: 1, 20>}, {pipeline_mode = #tpu.pipeline_mode<synchronous>, transform_indices = @transform_5, window_bounds = array<i64: 20, 128>}, {pipeline_mode = #tpu.pipeline_mode<synchronous>, transform_indices = @transform_6, window_bounds = array<i64: 1, 128>}, {transform_indices = @transform_7, window_bounds = array<i64: 8, 128>}]} {
    %c0 = arith.constant 0 : index
    %c0_0 = arith.constant 0 : index
    %0 = vector.load %arg1[%c0, %c0_0] : memref<8x24xf32, #tpu.memory_space<vmem>>, vector<8x24xf32>
    %c0_1 = arith.constant 0 : index
    %c0_2 = arith.constant 0 : index
    %1 = vector.load %arg2[%c0_1, %c0_2] : memref<24x20xf32, #tpu.memory_space<vmem>>, vector<24x20xf32>
    %cst = arith.constant dense<0.000000e+00> : vector<8x20xf32>
    %2 = tpu.matmul %0, %1, %cst {dimension_numbers = #tpu.dot_dimension_numbers<[1], [0], [0], [1], [0, 0, 1, 1], [], []>} : vector<8x24xf32>, vector<24x20xf32>, vector<8x20xf32> -> vector<8x20xf32>
    %c0_3 = arith.constant 0 : index
    %c0_4 = arith.constant 0 : index
    %3 = vector.load %arg3[%c0_3, %c0_4] : memref<1x20xf32, #tpu.memory_space<vmem>>, vector<1x20xf32>
    %4 = vector.broadcast %3 : vector<1x20xf32> to vector<8x20xf32>
    %5 = arith.addf %2, %4 : vector<8x20xf32>
    %cst_5 = arith.constant 0.000000e+00 : f32
    %6 = vector.broadcast %cst_5 : f32 to vector<8x20xf32>
    %7 = arith.maximumf %5, %6 : vector<8x20xf32>
    %c0_6 = arith.constant 0 : index
    %c0_7 = arith.constant 0 : index
    %8 = vector.load %arg4[%c0_6, %c0_7] : memref<20x20xf32, #tpu.memory_space<vmem>>, vector<20x20xf32>
    %cst_8 = arith.constant dense<0.000000e+00> : vector<8x20xf32>
    %9 = tpu.matmul %7, %8, %cst_8 {dimension_numbers = #tpu.dot_dimension_numbers<[1], [0], [0], [1], [0, 0, 1, 1], [], []>} : vector<8x20xf32>, vector<20x20xf32>, vector<8x20xf32> -> vector<8x20xf32>
    %c0_9 = arith.constant 0 : index
    %c0_10 = arith.constant 0 : index
    %10 = vector.load %arg5[%c0_9, %c0_10] : memref<1x20xf32, #tpu.memory_space<vmem>>, vector<1x20xf32>
    %11 = vector.broadcast %10 : vector<1x20xf32> to vector<8x20xf32>
    %12 = arith.addf %9, %11 : vector<8x20xf32>
    %cst_11 = arith.constant 0.000000e+00 : f32
    %13 = vector.broadcast %cst_11 : f32 to vector<8x20xf32>
    %14 = arith.maximumf %12, %13 : vector<8x20xf32>
    %c0_12 = arith.constant 0 : index
    %c0_13 = arith.constant 0 : index
    %15 = vector.load %arg6[%c0_12, %c0_13] : memref<20x128xf32, #tpu.memory_space<vmem>>, vector<20x128xf32>
    %cst_14 = arith.constant dense<0.000000e+00> : vector<8x128xf32>
    %16 = tpu.matmul %14, %15, %cst_14 {dimension_numbers = #tpu.dot_dimension_numbers<[1], [0], [0], [1], [0, 0, 1, 1], [], []>} : vector<8x20xf32>, vector<20x128xf32>, vector<8x128xf32> -> vector<8x128xf32>
    %c0_15 = arith.constant 0 : index
    %c0_16 = arith.constant 0 : index
    %17 = vector.load %arg7[%c0_15, %c0_16] : memref<1x128xf32, #tpu.memory_space<vmem>>, vector<1x128xf32>
    %18 = vector.broadcast %17 : vector<1x128xf32> to vector<8x128xf32>
    %19 = arith.addf %16, %18 : vector<8x128xf32>
    %c0_17 = arith.constant 0 : index
    %c0_18 = arith.constant 0 : index
    %20 = vector.load %arg8[%c0_17, %c0_18] : memref<8x128xf32, #tpu.memory_space<vmem>>, vector<8x128xf32>
    tpu.vector_store %arg8[%c0_17, %c0_18], %19 {strides = array<i32>} : memref<8x128xf32, #tpu.memory_space<vmem>>, vector<8x128xf32>,
    return
  }
  func.func @transform_0(%arg0: i32) -> (i32, i32) {
    %c0_i32 = arith.constant 0 : i32
    %c0_i32_0 = arith.constant 0 : i32
    return %arg0, %c0_i32 : i32, i32
  }
  func.func @transform_1(%arg0: i32) -> (i32, i32) {
    %c0_i32 = arith.constant 0 : i32
    %c0_i32_0 = arith.constant 0 : i32
    %c0_i32_1 = arith.constant 0 : i32
    return %c0_i32, %c0_i32_0 : i32, i32
  }
  func.func @transform_2(%arg0: i32) -> (i32, i32) {
    %c0_i32 = arith.constant 0 : i32
    %c0_i32_0 = arith.constant 0 : i32
    %c0_i32_1 = arith.constant 0 : i32
    return %c0_i32, %c0_i32_0 : i32, i32
  }
  func.func @transform_3(%arg0: i32) -> (i32, i32) {
    %c0_i32 = arith.constant 0 : i32
    %c0_i32_0 = arith.constant 0 : i32
    %c0_i32_1 = arith.constant 0 : i32
    return %c0_i32, %c0_i32_0 : i32, i32
  }
  func.func @transform_4(%arg0: i32) -> (i32, i32) {
    %c0_i32 = arith.constant 0 : i32
    %c0_i32_0 = arith.constant 0 : i32
    %c0_i32_1 = arith.constant 0 : i32
    return %c0_i32, %c0_i32_0 : i32, i32
  }
  func.func @transform_5(%arg0: i32) -> (i32, i32) {
    %c0_i32 = arith.constant 0 : i32
    %c0_i32_0 = arith.constant 0 : i32
    %c0_i32_1 = arith.constant 0 : i32
    return %c0_i32, %c0_i32_0 : i32, i32
  }
  func.func @transform_6(%arg0: i32) -> (i32, i32) {
    %c0_i32 = arith.constant 0 : i32
    %c0_i32_0 = arith.constant 0 : i32
    %c0_i32_1 = arith.constant 0 : i32
    return %c0_i32, %c0_i32_0 : i32, i32
  }
  func.func @transform_7(%arg0: i32) -> (i32, i32) {
    %c0_i32 = arith.constant 0 : i32
    %c0_i32_0 = arith.constant 0 : i32
    return %arg0, %c0_i32 : i32, i32
  }
}

</mosaic_0001>

<llo_original>
// kernel: tpu_custom_call.1
$region0: #{tpu_custom_call.1}
  #allocation0 [shape = 'u32[]', space=smem, size = 0x4, offset = 0x4, fixed_abs, tag = 'smem constant byte address 0x4 - core index']
  #allocation1 [shape = 'u32[144,128]{1,0:T(1,128)}', space=vmem, size = 0x12000, scoped, tag = 'internal scratch']
  %s0 = inlined_call_operand.hbm [shape: f32[8,24], index: 0, kind: input, shape index: {}]
  %s1 = inlined_call_operand.hbm [shape: f32[24,20], index: 1, kind: input, shape index: {}]
  %s2 = inlined_call_operand.vmem [shape: f32[1,20], index: 2, kind: input, shape index: {}]
  %s3 = inlined_call_operand.hbm [shape: f32[20,20], index: 3, kind: input, shape index: {}]
  %s4 = inlined_call_operand.vmem [shape: f32[1,20], index: 4, kind: input, shape index: {}]
  %s5 = inlined_call_operand.hbm [shape: f32[20,128], index: 5, kind: input, shape index: {}]
  %s6 = inlined_call_operand.vmem [shape: f32[1,128], index: 6, kind: input, shape index: {}]
  %s7 = inlined_call_operand.hbm [shape: f32[8,128], index: 7, kind: output, shape index: {}]
  %s8 = sld [smem:[#allocation0]]
  $region54: #{tpu_custom_call.1} parent=0
    _
  %s10 = ssub.s32 1, %s8
  %s11 = scalar_select 0, %s10, %s8
  $region1: #{tpu_custom_call.1} parent=0
    #allocation2 [shape = 'u8[4096]{0}', space=vmem, size = 0x1000, scoped, tag = 'input window, operand 0, single buffered']
    #allocation3 [shape = 's32[1]{0}', space=sflag, size = 0x4, scoped, tag = 'scoped memory for tpu_custom_call.1']
    #allocation4 [shape = 's32[1]{0}', space=sflag, size = 0x4, scoped, tag = 'scoped memory for tpu_custom_call.1']
    #allocation5 [shape = 'u8[12288]{0}', space=vmem, size = 0x3000, scoped, tag = 'input window, operand 1, single buffered']
    #allocation6 [shape = 's32[1]{0}', space=sflag, size = 0x4, scoped, tag = 'scoped memory for tpu_custom_call.1']
    #allocation7 [shape = 'u8[12288]{0}', space=vmem, size = 0x3000, scoped, tag = 'input window, operand 3, single buffered']
    #allocation8 [shape = 'u8[12288]{0}', space=vmem, size = 0x3000, scoped, tag = 'input window, operand 5, single buffered']
    #allocation9 [shape = 's32[1]{0}', space=sflag, size = 0x4, scoped, tag = 'scoped memory for tpu_custom_call.1']
    #allocation10 [shape = 'u8[4096]{0}', space=vmem, size = 0x1000, scoped, tag = 'output window, operand 0, single buffered']
    %12 = vsyncpa [#allocation3], 0
    %13 = vsyncpa [#allocation6], 0
    %14 = vsyncpa [#allocation9], 0
    %15 = vsyncpa [#allocation4], 0
    // Predicated region
    $region2: #{tpu_custom_call.1} parent=1 // pred_check
      _
    $region3: #{tpu_custom_call.1} parent=1 // pred_check_branch
      %17 = sbr.rel (0) target = $region5
    $region4: #{tpu_custom_call.1} parent=1 // pred_region
      %s19 = ssub.s32 128, 128
      %20 = vsyncadd [#allocation3], %s19
      %s22 = sshll.u32 [#allocation2], 4
      %s23 = int_to_ptr.vmem [resolvable:$true] %s22
      %25 = dma.hbm_to_vmem [thread:$0]  %s0, 128, %s23, [#allocation3]
    $region5: #{tpu_custom_call.1} parent=1 // pred_fallthru
      _
    // Predicated region
    $region6: #{tpu_custom_call.1} parent=1 // pred_check
      _
    $region7: #{tpu_custom_call.1} parent=1 // pred_check_branch
      %27 = sbr.rel (0) target = $region9
    $region8: #{tpu_custom_call.1} parent=1 // pred_region
      %s29 = ssub.s32 384, 384
      %30 = vsyncadd [#allocation6], %s29
      %s31 = sshll.u32 [#allocation5], 4
      %s32 = int_to_ptr.vmem [resolvable:$true] %s31
      %37 = dma.hbm_to_vmem [thread:$0]  %s1, 384, %s32, [#allocation6], 128, 128, 8
    $region9: #{tpu_custom_call.1} parent=1 // pred_fallthru
      _
    // Predicated region
    $region10: #{tpu_custom_call.1} parent=1 // pred_check
      _
    $region11: #{tpu_custom_call.1} parent=1 // pred_check_branch
      %39 = sbr.rel (0) target = $region13
    $region12: #{tpu_custom_call.1} parent=1 // pred_region
      _
    $region13: #{tpu_custom_call.1} parent=1 // pred_fallthru
      _
    // Predicated region
    $region14: #{tpu_custom_call.1} parent=1 // pred_check
      _
    $region15: #{tpu_custom_call.1} parent=1 // pred_check_branch
      %41 = sbr.rel (0) target = $region17
    $region16: #{tpu_custom_call.1} parent=1 // pred_region
      %s43 = ssub.s32 384, 384
      %44 = vsyncadd [#allocation6], %s43
      %s45 = sshll.u32 [#allocation7], 4
      %s46 = int_to_ptr.vmem [resolvable:$true] %s45
      %51 = dma.hbm_to_vmem [thread:$0]  %s3, 384, %s46, [#allocation6], 128, 128, 8
    $region17: #{tpu_custom_call.1} parent=1 // pred_fallthru
      _
    // Predicated region
    $region18: #{tpu_custom_call.1} parent=1 // pred_check
      _
    $region19: #{tpu_custom_call.1} parent=1 // pred_check_branch
      %53 = sbr.rel (0) target = $region21
    $region20: #{tpu_custom_call.1} parent=1 // pred_region
      _
    $region21: #{tpu_custom_call.1} parent=1 // pred_fallthru
      _
    // Predicated region
    $region22: #{tpu_custom_call.1} parent=1 // pred_check
      _
    $region23: #{tpu_custom_call.1} parent=1 // pred_check_branch
      %55 = sbr.rel (0) target = $region25
    $region24: #{tpu_custom_call.1} parent=1 // pred_region
      %s57 = ssub.s32 384, 384
      %58 = vsyncadd [#allocation9], %s57
      %s59 = sshll.u32 [#allocation8], 4
      %s60 = int_to_ptr.vmem [resolvable:$true] %s59
      %65 = dma.hbm_to_vmem [thread:$0]  %s5, 384, %s60, [#allocation9], 128, 128, 8
    $region25: #{tpu_custom_call.1} parent=1 // pred_fallthru
      _
    // Predicated region
    $region26: #{tpu_custom_call.1} parent=1 // pred_check
      _
    $region27: #{tpu_custom_call.1} parent=1 // pred_check_branch
      %67 = sbr.rel (0) target = $region29
    $region28: #{tpu_custom_call.1} parent=1 // pred_region
      _
    $region29: #{tpu_custom_call.1} parent=1 // pred_fallthru
      _
    // Predicated region
    $region30: #{tpu_custom_call.1} parent=1 // pred_check
      _
    $region31: #{tpu_custom_call.1} parent=1 // pred_check_branch
      %69 = sbr.rel (0) target = $region33
    $region32: #{tpu_custom_call.1} parent=1 // pred_region
      %70 = dma.done [#allocation3], 128
    $region33: #{tpu_custom_call.1} parent=1 // pred_fallthru
      _
    // Predicated region
    $region34: #{tpu_custom_call.1} parent=1 // pred_check
      _
    $region35: #{tpu_custom_call.1} parent=1 // pred_check_branch
      %72 = sbr.rel (0) target = $region37
    $region36: #{tpu_custom_call.1} parent=1 // pred_region
      %73 = dma.done [#allocation6], 384
    $region37: #{tpu_custom_call.1} parent=1 // pred_fallthru
      _
    // Predicated region
    $region38: #{tpu_custom_call.1} parent=1 // pred_check
      _
    $region39: #{tpu_custom_call.1} parent=1 // pred_check_branch
      %75 = sbr.rel (0) target = $region41
    $region40: #{tpu_custom_call.1} parent=1 // pred_region
      %76 = dma.done [#allocation6], 384
    $region41: #{tpu_custom_call.1} parent=1 // pred_fallthru
      _
    // Predicated region
    $region42: #{tpu_custom_call.1} parent=1 // pred_check
      _
    $region43: #{tpu_custom_call.1} parent=1 // pred_check_branch
      %78 = sbr.rel (0) target = $region45
    $region44: #{tpu_custom_call.1} parent=1 // pred_region
      %79 = dma.done [#allocation9], 384
    $region45: #{tpu_custom_call.1} parent=1 // pred_fallthru
      _
    %v80 = vld [vmem:[#allocation2] sm:$0xff]
    %v81 = vld [vmem:[#allocation5] sm:$0xff]
    %v82 = vld [vmem:[#allocation5 + $0x8] sm:$0xff]
    %v83 = vld [vmem:[#allocation5 + $0x10] sm:$0xff]
    %v84 = vld [vmem:[%s2] sm:$0x1]
    %v86 = vlaneseq
    %v87 = vshrl.u32 %v86, 7
    %v88 = vsub.s32 0, %v87
    %v89 = vrot.slane %v84, %v88
    %vm91 = vcmask 195584
    %v93 = vsel %vm91, %v80, 0
    %95 = vmatprep.subr.mxu0 0.0
    %96 = vmatpush1.msra.mxu0 0.0
    %97 = vmatprep.subr.mxu0 0.0
    %98 = vmatpush1.msra.mxu0 0.0
    %99 = vmatprep.subr.mxu0 0.0
    %100 = vmatpush1.msra.mxu0 0.0
    %101 = vmatprep.subr.mxu0 0.0
    %102 = vmatpush1.msra.mxu0 0.0
    %103 = vmatprep.subr.mxu0 0.0
    %104 = vmatpush1.msra.mxu0 0.0
    %105 = vmatprep.subr.mxu0 0.0
    %106 = vmatpush1.msra.mxu0 0.0
    %107 = vmatprep.subr.mxu0 0.0
    %108 = vmatpush1.msra.mxu0 0.0
    %109 = vmatprep.subr.mxu0 0.0
    %110 = vmatpush1.msra.mxu0 0.0
    %111 = vmatprep.subr.mxu0 0.0
    %112 = vmatpush1.msra.mxu0 0.0
    %113 = vmatprep.subr.mxu0 0.0
    %114 = vmatpush1.msra.mxu0 0.0
    %115 = vmatprep.subr.mxu0 0.0
    %116 = vmatpush1.msra.mxu0 0.0
    %117 = vmatprep.subr.mxu0 0.0
    %118 = vmatpush1.msra.mxu0 0.0
    %119 = vmatprep.subr.mxu0 0.0
    %120 = vmatpush1.msra.mxu0 0.0
    %121 = vmatprep.subr.mxu0 0.0
    %122 = vmatpush1.msra.mxu0 %v83
    %123 = vmatprep.subr.mxu0 0.0
    %124 = vmatpush1.msra.mxu0 %v82
    %125 = vmatprep.subr.mxu0 0.0
    %126 = vmatpush1.msra.mxu0 %v81
    %127 = vmatprep.subr.mxu0 0.0
    %128 = vmatpush2.msra.mxu0 0.0
    %129 = vmatprep.subr.mxu0 0.0
    %130 = vmatpush2.msra.mxu0 0.0
    %131 = vmatprep.subr.mxu0 0.0
    %132 = vmatpush2.msra.mxu0 0.0
    %133 = vmatprep.subr.mxu0 0.0
    %134 = vmatpush2.msra.mxu0 0.0
    %135 = vmatprep.subr.mxu0 0.0
    %136 = vmatpush2.msra.mxu0 0.0
    %137 = vmatprep.subr.mxu0 0.0
    %138 = vmatpush2.msra.mxu0 0.0
    %139 = vmatprep.subr.mxu0 0.0
    %140 = vmatpush2.msra.mxu0 0.0
    %141 = vmatprep.subr.mxu0 0.0
    %142 = vmatpush2.msra.mxu0 0.0
    %143 = vmatprep.subr.mxu0 0.0
    %144 = vmatpush2.msra.mxu0 0.0
    %145 = vmatprep.subr.mxu0 0.0
    %146 = vmatpush2.msra.mxu0 0.0
    %147 = vmatprep.subr.mxu0 0.0
    %148 = vmatpush2.msra.mxu0 0.0
    %149 = vmatprep.subr.mxu0 0.0
    %150 = vmatpush2.msra.mxu0 0.0
    %151 = vmatprep.subr.mxu0 0.0
    %152 = vmatpush2.msra.mxu0 0.0
    %153 = vmatprep.subr.mxu0 0.0
    %154 = vmatpush2.msra.mxu0 0.0
    %155 = vmatprep.subr.mxu0 0.0
    %156 = vmatpush2.msra.mxu0 0.0
    %157 = vmatprep.subr.mxu0 0.0
    %158 = vmatpush2.msra.mxu0 0.0
    %159 = vmatprep.mubr.f32.mxu0 0.0
    %160 = vmatmul.mubr.f32.gmra.mxu0 %v93
    %v161 = vpop.f32.mrf.mxu0
    %v162 = vadd.f32 %v89, %v161
    %v163 = vpop.f32.mrf.mxu0
    %164 = vdwg.mxu0
    %v165 = vmax.f32 %v162, 0.0
    %v166 = vld [vmem:[#allocation7] sm:$0xff]
    %v167 = vld [vmem:[#allocation7 + $0x8] sm:$0xff]
    %v168 = vld [vmem:[#allocation7 + $0x10] sm:$0xf]
    %v169 = vld [vmem:[%s4] sm:$0x1]
    %v171 = vlaneseq
    %v172 = vshrl.u32 %v171, 7
    %v173 = vsub.s32 0, %v172
    %v174 = vrot.slane %v169, %v173
    %vm176 = vcmask 162816
    %v178 = vsel %vm176, %v165, 0
    %vm180 = vcmask 1043456
    %v182 = vsel %vm180, %v168, 0
    %184 = vmatprep.subr.mxu0 0.0
    %185 = vmatpush1.msra.mxu0 0.0
    %186 = vmatprep.subr.mxu0 0.0
    %187 = vmatpush1.msra.mxu0 0.0
    %188 = vmatprep.subr.mxu0 0.0
    %189 = vmatpush1.msra.mxu0 0.0
    %190 = vmatprep.subr.mxu0 0.0
    %191 = vmatpush1.msra.mxu0 0.0
    %192 = vmatprep.subr.mxu0 0.0
    %193 = vmatpush1.msra.mxu0 0.0
    %194 = vmatprep.subr.mxu0 0.0
    %195 = vmatpush1.msra.mxu0 0.0
    %196 = vmatprep.subr.mxu0 0.0
    %197 = vmatpush1.msra.mxu0 0.0
    %198 = vmatprep.subr.mxu0 0.0
    %199 = vmatpush1.msra.mxu0 0.0
    %200 = vmatprep.subr.mxu0 0.0
    %201 = vmatpush1.msra.mxu0 0.0
    %202 = vmatprep.subr.mxu0 0.0
    %203 = vmatpush1.msra.mxu0 0.0
    %204 = vmatprep.subr.mxu0 0.0
    %205 = vmatpush1.msra.mxu0 0.0
    %206 = vmatprep.subr.mxu0 0.0
    %207 = vmatpush1.msra.mxu0 0.0
    %208 = vmatprep.subr.mxu0 0.0
    %209 = vmatpush1.msra.mxu0 0.0
    %210 = vmatprep.subr.mxu0 0.0
    %211 = vmatpush1.msra.mxu0 %v182
    %212 = vmatprep.subr.mxu0 0.0
    %213 = vmatpush1.msra.mxu0 %v167
    %214 = vmatprep.subr.mxu0 0.0
    %215 = vmatpush1.msra.mxu0 %v166
    %216 = vmatprep.subr.mxu0 0.0
    %217 = vmatpush2.msra.mxu0 0.0
    %218 = vmatprep.subr.mxu0 0.0
    %219 = vmatpush2.msra.mxu0 0.0
    %220 = vmatprep.subr.mxu0 0.0
    %221 = vmatpush2.msra.mxu0 0.0
    %222 = vmatprep.subr.mxu0 0.0
    %223 = vmatpush2.msra.mxu0 0.0
    %224 = vmatprep.subr.mxu0 0.0
    %225 = vmatpush2.msra.mxu0 0.0
    %226 = vmatprep.subr.mxu0 0.0
    %227 = vmatpush2.msra.mxu0 0.0
    %228 = vmatprep.subr.mxu0 0.0
    %229 = vmatpush2.msra.mxu0 0.0
    %230 = vmatprep.subr.mxu0 0.0
    %231 = vmatpush2.msra.mxu0 0.0
    %232 = vmatprep.subr.mxu0 0.0
    %233 = vmatpush2.msra.mxu0 0.0
    %234 = vmatprep.subr.mxu0 0.0
    %235 = vmatpush2.msra.mxu0 0.0
    %236 = vmatprep.subr.mxu0 0.0
    %237 = vmatpush2.msra.mxu0 0.0
    %238 = vmatprep.subr.mxu0 0.0
    %239 = vmatpush2.msra.mxu0 0.0
    %240 = vmatprep.subr.mxu0 0.0
    %241 = vmatpush2.msra.mxu0 0.0
    %242 = vmatprep.subr.mxu0 0.0
    %243 = vmatpush2.msra.mxu0 0.0
    %244 = vmatprep.subr.mxu0 0.0
    %245 = vmatpush2.msra.mxu0 0.0
    %246 = vmatprep.subr.mxu0 0.0
    %247 = vmatpush2.msra.mxu0 0.0
    %248 = vmatprep.mubr.f32.mxu0 0.0
    %249 = vmatmul.mubr.f32.gmra.mxu0 %v178
    %v250 = vpop.f32.mrf.mxu0
    %v251 = vadd.f32 %v174, %v250
    %v252 = vpop.f32.mrf.mxu0
    %253 = vdwg.mxu0
    %v254 = vmax.f32 %v251, 0.0
    %v255 = vld [vmem:[#allocation8] sm:$0xff]
    %v256 = vld [vmem:[#allocation8 + $0x8] sm:$0xff]
    %v257 = vld [vmem:[#allocation8 + $0x10] sm:$0xf]
    %v258 = vld [vmem:[%s6] sm:$0x1]
    %v260 = vlaneseq
    %v261 = vshrl.u32 %v260, 7
    %v262 = vsub.s32 0, %v261
    %v263 = vrot.slane %v258, %v262
    %v266 = vsel %vm176, %v254, 0
    %v269 = vsel %vm180, %v257, 0
    %271 = vmatprep.subr.mxu0 0.0
    %272 = vmatpush1.msra.mxu0 0.0
    %273 = vmatprep.subr.mxu0 0.0
    %274 = vmatpush1.msra.mxu0 0.0
    %275 = vmatprep.subr.mxu0 0.0
    %276 = vmatpush1.msra.mxu0 0.0
    %277 = vmatprep.subr.mxu0 0.0
    %278 = vmatpush1.msra.mxu0 0.0
    %279 = vmatprep.subr.mxu0 0.0
    %280 = vmatpush1.msra.mxu0 0.0
    %281 = vmatprep.subr.mxu0 0.0
    %282 = vmatpush1.msra.mxu0 0.0
    %283 = vmatprep.subr.mxu0 0.0
    %284 = vmatpush1.msra.mxu0 0.0
    %285 = vmatprep.subr.mxu0 0.0
    %286 = vmatpush1.msra.mxu0 0.0
    %287 = vmatprep.subr.mxu0 0.0
    %288 = vmatpush1.msra.mxu0 0.0
    %289 = vmatprep.subr.mxu0 0.0
    %290 = vmatpush1.msra.mxu0 0.0
    %291 = vmatprep.subr.mxu0 0.0
    %292 = vmatpush1.msra.mxu0 0.0
    %293 = vmatprep.subr.mxu0 0.0
    %294 = vmatpush1.msra.mxu0 0.0
    %295 = vmatprep.subr.mxu0 0.0
    %296 = vmatpush1.msra.mxu0 0.0
    %297 = vmatprep.subr.mxu0 0.0
    %298 = vmatpush1.msra.mxu0 %v269
    %299 = vmatprep.subr.mxu0 0.0
    %300 = vmatpush1.msra.mxu0 %v256
    %301 = vmatprep.subr.mxu0 0.0
    %302 = vmatpush1.msra.mxu0 %v255
    %303 = vmatprep.subr.mxu0 0.0
    %304 = vmatpush2.msra.mxu0 0.0
    %305 = vmatprep.subr.mxu0 0.0
    %306 = vmatpush2.msra.mxu0 0.0
    %307 = vmatprep.subr.mxu0 0.0
    %308 = vmatpush2.msra.mxu0 0.0
    %309 = vmatprep.subr.mxu0 0.0
    %310 = vmatpush2.msra.mxu0 0.0
    %311 = vmatprep.subr.mxu0 0.0
    %312 = vmatpush2.msra.mxu0 0.0
    %313 = vmatprep.subr.mxu0 0.0
    %314 = vmatpush2.msra.mxu0 0.0
    %315 = vmatprep.subr.mxu0 0.0
    %316 = vmatpush2.msra.mxu0 0.0
    %317 = vmatprep.subr.mxu0 0.0
    %318 = vmatpush2.msra.mxu0 0.0
    %319 = vmatprep.subr.mxu0 0.0
    %320 = vmatpush2.msra.mxu0 0.0
    %321 = vmatprep.subr.mxu0 0.0
    %322 = vmatpush2.msra.mxu0 0.0
    %323 = vmatprep.subr.mxu0 0.0
    %324 = vmatpush2.msra.mxu0 0.0
    %325 = vmatprep.subr.mxu0 0.0
    %326 = vmatpush2.msra.mxu0 0.0
    %327 = vmatprep.subr.mxu0 0.0
    %328 = vmatpush2.msra.mxu0 0.0
    %329 = vmatprep.subr.mxu0 0.0
    %330 = vmatpush2.msra.mxu0 0.0
    %331 = vmatprep.subr.mxu0 0.0
    %332 = vmatpush2.msra.mxu0 0.0
    %333 = vmatprep.subr.mxu0 0.0
    %334 = vmatpush2.msra.mxu0 0.0
    %335 = vmatprep.mubr.f32.mxu0 0.0
    %336 = vmatmul.mubr.f32.gmra.mxu0 %v266
    %v337 = vpop.f32.mrf.mxu0
    %v338 = vadd.f32 %v263, %v337
    %v339 = vpop.f32.mrf.mxu0
    %340 = vdwg.mxu0
    %341 = vst [vmem:[#allocation10] sm:$0xff] %v338
    // Predicated region
    $region46: #{tpu_custom_call.1} parent=1 // pred_check
      _
    $region47: #{tpu_custom_call.1} parent=1 // pred_check_branch
      %343 = sbr.rel (0) target = $region49
    $region48: #{tpu_custom_call.1} parent=1 // pred_region
      %s345 = ssub.s32 128, 128
      %346 = vsyncadd [#allocation4], %s345
      %s348 = sshll.u32 [#allocation10], 4
      %s349 = int_to_ptr.vmem [resolvable:$true] %s348
      %351 = dma.vmem_to_hbm [thread:$0]  %s349, 128, %s7, [#allocation4]
    $region49: #{tpu_custom_call.1} parent=1 // pred_fallthru
      _
    // Predicated region
    $region50: #{tpu_custom_call.1} parent=1 // pred_check
      _
    $region51: #{tpu_custom_call.1} parent=1 // pred_check_branch
      %353 = sbr.rel (0) target = $region53
    $region52: #{tpu_custom_call.1} parent=1 // pred_region
      %354 = dma.done [#allocation4], 128
    $region53: #{tpu_custom_call.1} parent=1 // pred_fallthru
      _
    %355 = vsyncpa [#allocation3], 1
    %356 = vsyncpa [#allocation6], 1
    %357 = vsyncpa [#allocation9], 1
    %358 = vsyncpa [#allocation4], 1

</llo_original>
